<compile_context>
chip_gen: v7x
topology: tpu7x:2x2x1
jax: 0.10.0
libtpu: 0.0.40
codegen_flags: <defaults>
</compile_context>

<pallas_src>
import functools

import jax
import jax.numpy as jnp
from jax import lax
from jax.experimental import pallas as pl
from jax.experimental.pallas import tpu as pltpu

_LANE = 128
_SUBLANE = 8


def _round_up(x, m):
    return (x + m - 1) // m * m


def _chip_name():
    """Best-effort lowercase chip identifier; '' if unavailable."""
    try:
        info = pltpu.get_tpu_info()
        for attr in ("chip_version", "chip_name", "name", "version"):
            v = getattr(info, attr, None)
            if v is not None:
                return str(v).lower()
    except Exception:
        pass
    return ""


def _vmem_capacity_bytes():
    try:
        return int(pltpu.get_tpu_info().vmem_capacity_bytes)
    except Exception:
        return 64 << 20  # conservative (v7x per-TensorCore)


def _default_batch_tile():
    # v6e/v7x MXUs are 2x256x256 -> M=256 fills the systolic array and halves grid
    # steps; v5e's MXU is 4x128x128, so 128 is the right tile there.
    name = _chip_name()
    if any(t in name for t in ("v6", "v7", "trillium")):
        return 256
    return 128


# --------------------------------------------------------------------------------------
# Kernel
# --------------------------------------------------------------------------------------
def _nlp_kernel(ids_ref, emb_ref, w1_ref, b1_ref, w2_ref, b2_ref, out_ref, *, count_dtype):
    """One batch tile of the full forward pass.

    ids_ref : VMEM [BT, S]   int32 token ids
    emb_ref : VMEM [Vp, Ep]  compute dtype (bf16/f32), zero padded
    w1_ref  : VMEM [Ep, Hp]  compute dtype
    b1_ref  : VMEM [1,  Hp]  f32
    w2_ref  : VMEM [Hp, Op]  compute dtype
    b2_ref  : VMEM [1,  Op]  f32
    out_ref : VMEM [BT, Op]  f32
    """
    BT, S = ids_ref.shape
    Vp = emb_ref.shape[0]
    cdtype = emb_ref.dtype

    ids = ids_ref[...]                                           # [BT, S] i32
    # Built once and reused for every sequence step (Mosaic does not CSE broadcasts).
    vocab_iota = lax.broadcasted_iota(jnp.int32, (BT, Vp), 1)    # lanes = vocab

    # counts[b, v] = #occurrences of token v in row b.  Fully-unrolled static loop
    # (S is a Python int): peak live intermediates stay at ~2 x [BT, Vp] rather than
    # the old [BT, S, Vp] one-hot + iota, which spilled past the 64-vreg file.
    counts = jnp.zeros((BT, Vp), count_dtype)
    for s in range(S):
        counts = counts + (ids[:, s:s + 1] == vocab_iota).astype(count_dtype)

    # mean(emb[ids], axis=1) == (counts @ emb) / S.  The LHS stays exactly
    # integer-valued (exact in bf16 for S <= 256); 1/S is applied in f32 afterwards.
    emb_mean = jnp.dot(counts.astype(cdtype), emb_ref[...],
                       preferred_element_type=jnp.float32) * (1.0 / S)  # [BT, Ep] f32

    # ---- fc1 + ReLU -----------------------------------------------------------------
    h = jnp.dot(emb_mean.astype(cdtype), w1_ref[...],
                preferred_element_type=jnp.float32) + b1_ref[...]
    h = jnp.maximum(h, 0.0)

    # ---- fc2 + Sigmoid --------------------------------------------------------------
    o = jnp.dot(h.astype(cdtype), w2_ref[...],
                preferred_element_type=jnp.float32) + b2_ref[...]
    out_ref[...] = jax.nn.sigmoid(o).astype(out_ref.dtype)


# --------------------------------------------------------------------------------------
# Model-load-time parameter preparation (padding + cast done ONCE, not per call)
# --------------------------------------------------------------------------------------
def prepare_nlp_params(emb_table, w1, b1, w2, b2, compute_dtype=jnp.bfloat16):
    """Pad weights to lane-dense multiples of 128 and cast to the compute dtype.

    Weights are stored [in, out] (transposed vs. nn.Linear's [out, in]).
    """
    V, E = emb_table.shape
    H = w1.shape[1]
    O = w2.shape[1]
    Vp, Ep, Hp, Op = (_round_up(d, _LANE) for d in (V, E, H, O))

    emb_p = jnp.pad(emb_table, ((0, Vp - V), (0, Ep - E))).astype(compute_dtype)
    w1_p = jnp.pad(w1, ((0, Ep - E), (0, Hp - H))).astype(compute_dtype)
    w2_p = jnp.pad(w2, ((0, Hp - H), (0, Op - O))).astype(compute_dtype)
    b1_p = jnp.pad(b1.reshape(1, H).astype(jnp.float32), ((0, 0), (0, Hp - H)))
    b2_p = jnp.pad(b2.reshape(1, O).astype(jnp.float32), ((0, 0), (0, Op - O)))
    return dict(emb=emb_p, w1=w1_p, b1=b1_p, w2=w2_p, b2=b2_p, out_dim=O)


# --------------------------------------------------------------------------------------
# Forward
# --------------------------------------------------------------------------------------
@functools.partial(jax.jit, static_argnames=("batch_tile", "single_buffer_weights",
                                              "count_in_f32"))
def _nlp_forward_impl(text, emb_p, w1_p, b1_p, w2_p, b2_p, *,
                      batch_tile, single_buffer_weights, count_in_f32):
    B, S = text.shape
    Vp, Ep = emb_p.shape
    Hp = w1_p.shape[1]
    Op = w2_p.shape[1]
    csize = emb_p.dtype.itemsize

    B8 = _round_up(B, _SUBLANE)
    BT = min(batch_tile, B8)
    Bp = _round_up(B, BT)
    grid = (Bp // BT,)

    ids_p = jnp.pad(text.astype(jnp.int32), ((0, Bp - B), (0, 0)))

    # Counts accumulator dtype: bf16 is exact for integer counts <= 256 and uses the
    # bf16-capable VALU on v6e/v7x; fall back to f32 otherwise (v5e, f32 compute, long S).
    use_bf16_counts = (emb_p.dtype == jnp.bfloat16) and (S <= 256) and not count_in_f32
    count_dtype = jnp.bfloat16 if use_bf16_counts else jnp.float32
    kernel = functools.partial(_nlp_kernel, count_dtype=count_dtype)

    # VMEM budget: resident weights (single buffer) + double-buffered ids/out blocks
    # + in-kernel intermediates (~3 x [BT, Vp] words + activations) + slack, capped at
    # ~75% of physical VMEM (~48 MiB on v7x, ~96 MiB on v5e/v6e).
    weight_bytes = (Vp * Ep + Ep * Hp + Hp * Op) * csize + (Hp + Op) * 4
    if not single_buffer_weights:
        weight_bytes *= 2
    io_bytes = 2 * BT * (S + Op) * 4
    interm_bytes = BT * Vp * 12 + BT * (Ep + Hp + 2 * Op) * 4
    est = weight_bytes + io_bytes + interm_bytes + (2 << 20)
    vmem_limit = int(min(max(est, 16 << 20), _vmem_capacity_bytes() * 3 // 4))

    # TODO(synk): for large vocabularies (padded table > ~1/3 of VMEM) keep emb_table in
    # HBM via pl.BlockSpec(memory_space=pl.ANY), scalar-prefetch the ids, and DMA-gather
    # only the touched rows instead of the counts-matmul (cost then scales with B*S*E).
    if single_buffer_weights:
        def resident(shape):
            return pl.BlockSpec(shape, lambda i: (0, 0), pipeline_mode=pl.Buffered(1))
    else:
        def resident(shape):
            return pl.BlockSpec(shape, lambda i: (0, 0))

    # TODO(synk): on v7x verify the single "parallel" batch axis shards across both
    # TensorCores; if not, add an explicit core axis (pltpu.CORE_PARALLEL / pl.core_map).
    out_p = pl.pallas_call(
        kernel,
        out_shape=jax.ShapeDtypeStruct((Bp, Op), jnp.float32),
        grid=grid,
        in_specs=[
            pl.BlockSpec((BT, S), lambda i: (i, 0)),   # token ids (per batch tile)
            resident((Vp, Ep)),                        # embedding table (VMEM resident)
            resident((Ep, Hp)),                        # W1
            resident((1, Hp)),                         # b1
            resident((Hp, Op)),                        # W2
            resident((1, Op)),                         # b2
        ],
        out_specs=pl.BlockSpec((BT, Op), lambda i: (i, 0)),
        compiler_params=pltpu.CompilerParams(
            dimension_semantics=("parallel",),
            vmem_limit_bytes=vmem_limit),
    )(ids_p, emb_p, w1_p, b1_p, w2_p, b2_p)
    return out_p


def nlp_forward(text, params, batch_tile=None):
    """text: [B, S] int token ids; params from prepare_nlp_params. Returns [B, O] f32."""
    B = text.shape[0]
    O = params["out_dim"]
    if batch_tile is None:
        batch_tile = _default_batch_tile()
    count_in_f32 = "v5" in _chip_name()  # v5e has no bf16 VPU
    args = (text, params["emb"], params["w1"], params["b1"], params["w2"], params["b2"])
    try:
        out_p = _nlp_forward_impl(*args, batch_tile=batch_tile,
                                  single_buffer_weights=True,
                                  count_in_f32=count_in_f32)
    except Exception:
        # pl.Buffered(1) unavailable / rejected on this jax version: fall back to the
        # default double-buffered BlockSpecs (correct, just wastes some VMEM).
        out_p = _nlp_forward_impl(*args, batch_tile=batch_tile,
                                  single_buffer_weights=False,
                                  count_in_f32=count_in_f32)
    return out_p[:B, :O]


def nlp_reference(text, emb_table, w1, b1, w2, b2):
    """Pure-JAX reference mirroring the PyTorch forward."""
    embedded = emb_table[text].mean(axis=1)          # [B, E]
    h = jnp.maximum(embedded @ w1 + b1, 0.0)         # fc1 + ReLU
    return jax.nn.sigmoid(h @ w2 + b2)               # fc2 + Sigmoid


if __name__ == "__main__":
    # Small deterministic setup mirroring NLP.__init__ / init_weight.
    input_dim = 32        # vocab size
    embedding_dim = 16
    hidden_dim = 32
    output_dim = 4
    batch, seq = 2, 8

    key = jax.random.PRNGKey(0)
    k_ids, k_emb, k_w1, k_w2 = jax.random.split(key, 4)

    text = jax.random.randint(k_ids, (batch, seq), 0, input_dim, dtype=jnp.int32)

    init_range = 0.5
    emb_table = jax.random.uniform(k_emb, (input_dim, embedding_dim), jnp.float32,
                                   -init_range, init_range)
    # nn.Linear stores weight as [out, in]; we keep the transposed [in, out] layout.
    w1 = jax.random.uniform(k_w1, (embedding_dim, hidden_dim), jnp.float32,
                            -init_range, init_range)
    b1 = jnp.zeros((hidden_dim,), jnp.float32)       # fc1.bias.zero_()
    w2 = jax.random.uniform(k_w2, (hidden_dim, output_dim), jnp.float32,
                            -init_range, init_range)
    b2 = jnp.zeros((output_dim,), jnp.float32)

    ref = nlp_reference(text, emb_table, w1, b1, w2, b2)

    # f32 compute path (tighter check).
    params_f32 = prepare_nlp_params(emb_table, w1, b1, w2, b2, compute_dtype=jnp.float32)
    out_f32 = jax.block_until_ready(nlp_forward(text, params_f32))
    assert out_f32.shape == (batch, output_dim), out_f32.shape
    assert jnp.allclose(out_f32, ref, atol=1e-2, rtol=1e-2), (out_f32, ref)

    # Default bf16 weights + f32 accumulation (MXU-friendly on v6e/v7x).
    params_bf16 = prepare_nlp_params(emb_table, w1, b1, w2, b2)
    out_bf16 = jax.block_until_ready(nlp_forward(text, params_bf16))
    assert out_bf16.shape == (batch, output_dim), out_bf16.shape
    assert jnp.allclose(out_bf16, ref, atol=2.5e-2, rtol=2.5e-2), (out_bf16, ref)

    print("KERNEL_OK")
</pallas_src>

<mosaic_0001>
module attributes {stable_mosaic.version = 11 : i64} {
  func.func @_nlp_kernel(%arg0: i32, %arg1: memref<8x8xi32, #tpu.memory_space<vmem>>, %arg2: memref<128x128xf32, #tpu.memory_space<vmem>>, %arg3: memref<128x128xf32, #tpu.memory_space<vmem>>, %arg4: memref<1x128xf32, #tpu.memory_space<vmem>>, %arg5: memref<128x128xf32, #tpu.memory_space<vmem>>, %arg6: memref<1x128xf32, #tpu.memory_space<vmem>>, %arg7: memref<8x128xf32, #tpu.memory_space<vmem>>) attributes {dimension_semantics = [#tpu.dimension_semantics<parallel>], iteration_bounds = array<i64: 1>, scalar_prefetch = 0 : i64, scratch_operands = 0 : i64, tpu.core_type = #tpu.core_type<tc>, window_params = [{transform_indices = @transform_0, window_bounds = array<i64: 8, 8>}, {pipeline_mode = #tpu.pipeline_mode<synchronous>, transform_indices = @transform_1, window_bounds = array<i64: 128, 128>}, {pipeline_mode = #tpu.pipeline_mode<synchronous>, transform_indices = @transform_2, window_bounds = array<i64: 128, 128>}, {pipeline_mode = #tpu.pipeline_mode<synchronous>, transform_indices = @transform_3, window_bounds = array<i64: 1, 128>}, {pipeline_mode = #tpu.pipeline_mode<synchronous>, transform_indices = @transform_4, window_bounds = array<i64: 128, 128>}, {pipeline_mode = #tpu.pipeline_mode<synchronous>, transform_indices = @transform_5, window_bounds = array<i64: 1, 128>}, {transform_indices = @transform_6, window_bounds = array<i64: 8, 128>}]} {
    %c0 = arith.constant 0 : index
    %c0_0 = arith.constant 0 : index
    %0 = vector.load %arg1[%c0, %c0_0] : memref<8x8xi32, #tpu.memory_space<vmem>>, vector<8x8xi32>
    %1 = tpu.iota {dimensions = array<i32: 1>} : vector<8x128xi32>
    %cst = arith.constant 0.000000e+00 : f32
    %2 = vector.broadcast %cst : f32 to vector<8x128xf32>
    %3 = vector.extract_strided_slice %0 {offsets = [0, 0], sizes = [8, 1], strides = [1, 1]} : vector<8x8xi32> to vector<8x1xi32>
    %4 = vector.broadcast %3 : vector<8x1xi32> to vector<8x128xi32>
    %5 = arith.cmpi eq, %4, %1 : vector<8x128xi32>
    %6 = arith.extui %5 : vector<8x128xi1> to vector<8x128xi32>
    %7 = arith.sitofp %6 : vector<8x128xi32> to vector<8x128xf32>
    %8 = arith.addf %2, %7 : vector<8x128xf32>
    %9 = vector.extract_strided_slice %0 {offsets = [0, 1], sizes = [8, 1], strides = [1, 1]} : vector<8x8xi32> to vector<8x1xi32>
    %10 = vector.broadcast %9 : vector<8x1xi32> to vector<8x128xi32>
    %11 = arith.cmpi eq, %10, %1 : vector<8x128xi32>
    %12 = arith.extui %11 : vector<8x128xi1> to vector<8x128xi32>
    %13 = arith.sitofp %12 : vector<8x128xi32> to vector<8x128xf32>
    %14 = arith.addf %8, %13 : vector<8x128xf32>
    %15 = vector.extract_strided_slice %0 {offsets = [0, 2], sizes = [8, 1], strides = [1, 1]} : vector<8x8xi32> to vector<8x1xi32>
    %16 = vector.broadcast %15 : vector<8x1xi32> to vector<8x128xi32>
    %17 = arith.cmpi eq, %16, %1 : vector<8x128xi32>
    %18 = arith.extui %17 : vector<8x128xi1> to vector<8x128xi32>
    %19 = arith.sitofp %18 : vector<8x128xi32> to vector<8x128xf32>
    %20 = arith.addf %14, %19 : vector<8x128xf32>
    %21 = vector.extract_strided_slice %0 {offsets = [0, 3], sizes = [8, 1], strides = [1, 1]} : vector<8x8xi32> to vector<8x1xi32>
    %22 = vector.broadcast %21 : vector<8x1xi32> to vector<8x128xi32>
    %23 = arith.cmpi eq, %22, %1 : vector<8x128xi32>
    %24 = arith.extui %23 : vector<8x128xi1> to vector<8x128xi32>
    %25 = arith.sitofp %24 : vector<8x128xi32> to vector<8x128xf32>
    %26 = arith.addf %20, %25 : vector<8x128xf32>
    %27 = vector.extract_strided_slice %0 {offsets = [0, 4], sizes = [8, 1], strides = [1, 1]} : vector<8x8xi32> to vector<8x1xi32>
    %28 = vector.broadcast %27 : vector<8x1xi32> to vector<8x128xi32>
    %29 = arith.cmpi eq, %28, %1 : vector<8x128xi32>
    %30 = arith.extui %29 : vector<8x128xi1> to vector<8x128xi32>
    %31 = arith.sitofp %30 : vector<8x128xi32> to vector<8x128xf32>
    %32 = arith.addf %26, %31 : vector<8x128xf32>
    %33 = vector.extract_strided_slice %0 {offsets = [0, 5], sizes = [8, 1], strides = [1, 1]} : vector<8x8xi32> to vector<8x1xi32>
    %34 = vector.broadcast %33 : vector<8x1xi32> to vector<8x128xi32>
    %35 = arith.cmpi eq, %34, %1 : vector<8x128xi32>
    %36 = arith.extui %35 : vector<8x128xi1> to vector<8x128xi32>
    %37 = arith.sitofp %36 : vector<8x128xi32> to vector<8x128xf32>
    %38 = arith.addf %32, %37 : vector<8x128xf32>
    %39 = vector.extract_strided_slice %0 {offsets = [0, 6], sizes = [8, 1], strides = [1, 1]} : vector<8x8xi32> to vector<8x1xi32>
    %40 = vector.broadcast %39 : vector<8x1xi32> to vector<8x128xi32>
    %41 = arith.cmpi eq, %40, %1 : vector<8x128xi32>
    %42 = arith.extui %41 : vector<8x128xi1> to vector<8x128xi32>
    %43 = arith.sitofp %42 : vector<8x128xi32> to vector<8x128xf32>
    %44 = arith.addf %38, %43 : vector<8x128xf32>
    %45 = vector.extract_strided_slice %0 {offsets = [0, 7], sizes = [8, 1], strides = [1, 1]} : vector<8x8xi32> to vector<8x1xi32>
    %46 = vector.broadcast %45 : vector<8x1xi32> to vector<8x128xi32>
    %47 = arith.cmpi eq, %46, %1 : vector<8x128xi32>
    %48 = arith.extui %47 : vector<8x128xi1> to vector<8x128xi32>
    %49 = arith.sitofp %48 : vector<8x128xi32> to vector<8x128xf32>
    %50 = arith.addf %44, %49 : vector<8x128xf32>
    %c0_1 = arith.constant 0 : index
    %c0_2 = arith.constant 0 : index
    %51 = vector.load %arg2[%c0_1, %c0_2] : memref<128x128xf32, #tpu.memory_space<vmem>>, vector<128x128xf32>
    %cst_3 = arith.constant dense<0.000000e+00> : vector<8x128xf32>
    %52 = tpu.matmul %50, %51, %cst_3 {dimension_numbers = #tpu.dot_dimension_numbers<[1], [0], [0], [1], [0, 0, 1, 1], [], []>} : vector<8x128xf32>, vector<128x128xf32>, vector<8x128xf32> -> vector<8x128xf32>
    %cst_4 = arith.constant 1.250000e-01 : f32
    %53 = vector.broadcast %cst_4 : f32 to vector<8x128xf32>
    %54 = arith.mulf %52, %53 : vector<8x128xf32>
    %c0_5 = arith.constant 0 : index
    %c0_6 = arith.constant 0 : index
    %55 = vector.load %arg3[%c0_5, %c0_6] : memref<128x128xf32, #tpu.memory_space<vmem>>, vector<128x128xf32>
    %cst_7 = arith.constant dense<0.000000e+00> : vector<8x128xf32>
    %56 = tpu.matmul %54, %55, %cst_7 {dimension_numbers = #tpu.dot_dimension_numbers<[1], [0], [0], [1], [0, 0, 1, 1], [], []>} : vector<8x128xf32>, vector<128x128xf32>, vector<8x128xf32> -> vector<8x128xf32>
    %c0_8 = arith.constant 0 : index
    %c0_9 = arith.constant 0 : index
    %57 = vector.load %arg4[%c0_8, %c0_9] : memref<1x128xf32, #tpu.memory_space<vmem>>, vector<1x128xf32>
    %58 = vector.broadcast %57 : vector<1x128xf32> to vector<8x128xf32>
    %59 = arith.addf %56, %58 : vector<8x128xf32>
    %cst_10 = arith.constant 0.000000e+00 : f32
    %60 = vector.broadcast %cst_10 : f32 to vector<8x128xf32>
    %61 = arith.maximumf %59, %60 : vector<8x128xf32>
    %c0_11 = arith.constant 0 : index
    %c0_12 = arith.constant 0 : index
    %62 = vector.load %arg5[%c0_11, %c0_12] : memref<128x128xf32, #tpu.memory_space<vmem>>, vector<128x128xf32>
    %cst_13 = arith.constant dense<0.000000e+00> : vector<8x128xf32>
    %63 = tpu.matmul %61, %62, %cst_13 {dimension_numbers = #tpu.dot_dimension_numbers<[1], [0], [0], [1], [0, 0, 1, 1], [], []>} : vector<8x128xf32>, vector<128x128xf32>, vector<8x128xf32> -> vector<8x128xf32>
    %c0_14 = arith.constant 0 : index
    %c0_15 = arith.constant 0 : index
    %64 = vector.load %arg6[%c0_14, %c0_15] : memref<1x128xf32, #tpu.memory_space<vmem>>, vector<1x128xf32>
    %65 = vector.broadcast %64 : vector<1x128xf32> to vector<8x128xf32>
    %66 = arith.addf %63, %65 : vector<8x128xf32>
    %67 = arith.negf %66 : vector<8x128xf32>
    %68 = math.exp %67 : vector<8x128xf32>
    %cst_16 = arith.constant 1.000000e+00 : f32
    %69 = vector.broadcast %cst_16 : f32 to vector<8x128xf32>
    %70 = arith.addf %69, %68 : vector<8x128xf32>
    %71 = arith.divf %69, %70 : vector<8x128xf32>
    %c0_17 = arith.constant 0 : index
    %c0_18 = arith.constant 0 : index
    %72 = vector.load %arg7[%c0_17, %c0_18] : memref<8x128xf32, #tpu.memory_space<vmem>>, vector<8x128xf32>
    tpu.vector_store %arg7[%c0_17, %c0_18], %71 {strides = array<i32>} : memref<8x128xf32, #tpu.memory_space<vmem>>, vector<8x128xf32>,
    return
  }
  func.func @transform_0(%arg0: i32) -> (i32, i32) {
    %c0_i32 = arith.constant 0 : i32
    %c0_i32_0 = arith.constant 0 : i32
    return %arg0, %c0_i32 : i32, i32
  }
  func.func @transform_1(%arg0: i32) -> (i32, i32) {
    %c0_i32 = arith.constant 0 : i32
    %c0_i32_0 = arith.constant 0 : i32
    %c0_i32_1 = arith.constant 0 : i32
    return %c0_i32, %c0_i32_0 : i32, i32
  }
  func.func @transform_2(%arg0: i32) -> (i32, i32) {
    %c0_i32 = arith.constant 0 : i32
    %c0_i32_0 = arith.constant 0 : i32
    %c0_i32_1 = arith.constant 0 : i32
    return %c0_i32, %c0_i32_0 : i32, i32
  }
  func.func @transform_3(%arg0: i32) -> (i32, i32) {
    %c0_i32 = arith.constant 0 : i32
    %c0_i32_0 = arith.constant 0 : i32
    %c0_i32_1 = arith.constant 0 : i32
    return %c0_i32, %c0_i32_0 : i32, i32
  }
  func.func @transform_4(%arg0: i32) -> (i32, i32) {
    %c0_i32 = arith.constant 0 : i32
    %c0_i32_0 = arith.constant 0 : i32
    %c0_i32_1 = arith.constant 0 : i32
    return %c0_i32, %c0_i32_0 : i32, i32
  }
  func.func @transform_5(%arg0: i32) -> (i32, i32) {
    %c0_i32 = arith.constant 0 : i32
    %c0_i32_0 = arith.constant 0 : i32
    %c0_i32_1 = arith.constant 0 : i32
    return %c0_i32, %c0_i32_0 : i32, i32
  }
  func.func @transform_6(%arg0: i32) -> (i32, i32) {
    %c0_i32 = arith.constant 0 : i32
    %c0_i32_0 = arith.constant 0 : i32
    return %arg0, %c0_i32 : i32, i32
  }
}

module attributes {stable_mosaic.version = 11 : i64} {
  func.func @_nlp_kernel(%arg0: i32, %arg1: memref<8x8xi32, #tpu.memory_space<vmem>>, %arg2: memref<128x128xf32, #tpu.memory_space<vmem>>, %arg3: memref<128x128xf32, #tpu.memory_space<vmem>>, %arg4: memref<1x128xf32, #tpu.memory_space<vmem>>, %arg5: memref<128x128xf32, #tpu.memory_space<vmem>>, %arg6: memref<1x128xf32, #tpu.memory_space<vmem>>, %arg7: memref<8x128xf32, #tpu.memory_space<vmem>>) attributes {dimension_semantics = [#tpu.dimension_semantics<parallel>], iteration_bounds = array<i64: 1>, scalar_prefetch = 0 : i64, scratch_operands = 0 : i64, tpu.core_type = #tpu.core_type<tc>, window_params = [{transform_indices = @transform_0, window_bounds = array<i64: 8, 8>}, {pipeline_mode = #tpu.pipeline_mode<synchronous>, transform_indices = @transform_1, window_bounds = array<i64: 128, 128>}, {pipeline_mode = #tpu.pipeline_mode<synchronous>, transform_indices = @transform_2, window_bounds = array<i64: 128, 128>}, {pipeline_mode = #tpu.pipeline_mode<synchronous>, transform_indices = @transform_3, window_bounds = array<i64: 1, 128>}, {pipeline_mode = #tpu.pipeline_mode<synchronous>, transform_indices = @transform_4, window_bounds = array<i64: 128, 128>}, {pipeline_mode = #tpu.pipeline_mode<synchronous>, transform_indices = @transform_5, window_bounds = array<i64: 1, 128>}, {transform_indices = @transform_6, window_bounds = array<i64: 8, 128>}]} {
    %c0 = arith.constant 0 : index
    %c0_0 = arith.constant 0 : index
    %0 = vector.load %arg1[%c0, %c0_0] : memref<8x8xi32, #tpu.memory_space<vmem>>, vector<8x8xi32>
    %1 = tpu.iota {dimensions = array<i32: 1>} : vector<8x128xi32>
    %cst = arith.constant 0.000000e+00 : f32
    %2 = vector.broadcast %cst : f32 to vector<8x128xf32>
    %3 = vector.extract_strided_slice %0 {offsets = [0, 0], sizes = [8, 1], strides = [1, 1]} : vector<8x8xi32> to vector<8x1xi32>
    %4 = vector.broadcast %3 : vector<8x1xi32> to vector<8x128xi32>
    %5 = arith.cmpi eq, %4, %1 : vector<8x128xi32>
    %6 = arith.extui %5 : vector<8x128xi1> to vector<8x128xi32>
    %7 = arith.sitofp %6 : vector<8x128xi32> to vector<8x128xf32>
    %8 = arith.addf %2, %7 : vector<8x128xf32>
    %9 = vector.extract_strided_slice %0 {offsets = [0, 1], sizes = [8, 1], strides = [1, 1]} : vector<8x8xi32> to vector<8x1xi32>
    %10 = vector.broadcast %9 : vector<8x1xi32> to vector<8x128xi32>
    %11 = arith.cmpi eq, %10, %1 : vector<8x128xi32>
    %12 = arith.extui %11 : vector<8x128xi1> to vector<8x128xi32>
    %13 = arith.sitofp %12 : vector<8x128xi32> to vector<8x128xf32>
    %14 = arith.addf %8, %13 : vector<8x128xf32>
    %15 = vector.extract_strided_slice %0 {offsets = [0, 2], sizes = [8, 1], strides = [1, 1]} : vector<8x8xi32> to vector<8x1xi32>
    %16 = vector.broadcast %15 : vector<8x1xi32> to vector<8x128xi32>
    %17 = arith.cmpi eq, %16, %1 : vector<8x128xi32>
    %18 = arith.extui %17 : vector<8x128xi1> to vector<8x128xi32>
    %19 = arith.sitofp %18 : vector<8x128xi32> to vector<8x128xf32>
    %20 = arith.addf %14, %19 : vector<8x128xf32>
    %21 = vector.extract_strided_slice %0 {offsets = [0, 3], sizes = [8, 1], strides = [1, 1]} : vector<8x8xi32> to vector<8x1xi32>
    %22 = vector.broadcast %21 : vector<8x1xi32> to vector<8x128xi32>
    %23 = arith.cmpi eq, %22, %1 : vector<8x128xi32>
    %24 = arith.extui %23 : vector<8x128xi1> to vector<8x128xi32>
    %25 = arith.sitofp %24 : vector<8x128xi32> to vector<8x128xf32>
    %26 = arith.addf %20, %25 : vector<8x128xf32>
    %27 = vector.extract_strided_slice %0 {offsets = [0, 4], sizes = [8, 1], strides = [1, 1]} : vector<8x8xi32> to vector<8x1xi32>
    %28 = vector.broadcast %27 : vector<8x1xi32> to vector<8x128xi32>
    %29 = arith.cmpi eq, %28, %1 : vector<8x128xi32>
    %30 = arith.extui %29 : vector<8x128xi1> to vector<8x128xi32>
    %31 = arith.sitofp %30 : vector<8x128xi32> to vector<8x128xf32>
    %32 = arith.addf %26, %31 : vector<8x128xf32>
    %33 = vector.extract_strided_slice %0 {offsets = [0, 5], sizes = [8, 1], strides = [1, 1]} : vector<8x8xi32> to vector<8x1xi32>
    %34 = vector.broadcast %33 : vector<8x1xi32> to vector<8x128xi32>
    %35 = arith.cmpi eq, %34, %1 : vector<8x128xi32>
    %36 = arith.extui %35 : vector<8x128xi1> to vector<8x128xi32>
    %37 = arith.sitofp %36 : vector<8x128xi32> to vector<8x128xf32>
    %38 = arith.addf %32, %37 : vector<8x128xf32>
    %39 = vector.extract_strided_slice %0 {offsets = [0, 6], sizes = [8, 1], strides = [1, 1]} : vector<8x8xi32> to vector<8x1xi32>
    %40 = vector.broadcast %39 : vector<8x1xi32> to vector<8x128xi32>
    %41 = arith.cmpi eq, %40, %1 : vector<8x128xi32>
    %42 = arith.extui %41 : vector<8x128xi1> to vector<8x128xi32>
    %43 = arith.sitofp %42 : vector<8x128xi32> to vector<8x128xf32>
    %44 = arith.addf %38, %43 : vector<8x128xf32>
    %45 = vector.extract_strided_slice %0 {offsets = [0, 7], sizes = [8, 1], strides = [1, 1]} : vector<8x8xi32> to vector<8x1xi32>
    %46 = vector.broadcast %45 : vector<8x1xi32> to vector<8x128xi32>
    %47 = arith.cmpi eq, %46, %1 : vector<8x128xi32>
    %48 = arith.extui %47 : vector<8x128xi1> to vector<8x128xi32>
    %49 = arith.sitofp %48 : vector<8x128xi32> to vector<8x128xf32>
    %50 = arith.addf %44, %49 : vector<8x128xf32>
    %c0_1 = arith.constant 0 : index
    %c0_2 = arith.constant 0 : index
    %51 = vector.load %arg2[%c0_1, %c0_2] : memref<128x128xf32, #tpu.memory_space<vmem>>, vector<128x128xf32>
    %cst_3 = arith.constant dense<0.000000e+00> : vector<8x128xf32>
    %52 = tpu.matmul %50, %51, %cst_3 {dimension_numbers = #tpu.dot_dimension_numbers<[1], [0], [0], [1], [0, 0, 1, 1], [], []>} : vector<8x128xf32>, vector<128x128xf32>, vector<8x128xf32> -> vector<8x128xf32>
    %cst_4 = arith.constant 1.250000e-01 : f32
    %53 = vector.broadcast %cst_4 : f32 to vector<8x128xf32>
    %54 = arith.mulf %52, %53 : vector<8x128xf32>
    %c0_5 = arith.constant 0 : index
    %c0_6 = arith.constant 0 : index
    %55 = vector.load %arg3[%c0_5, %c0_6] : memref<128x128xf32, #tpu.memory_space<vmem>>, vector<128x128xf32>
    %cst_7 = arith.constant dense<0.000000e+00> : vector<8x128xf32>
    %56 = tpu.matmul %54, %55, %cst_7 {dimension_numbers = #tpu.dot_dimension_numbers<[1], [0], [0], [1], [0, 0, 1, 1], [], []>} : vector<8x128xf32>, vector<128x128xf32>, vector<8x128xf32> -> vector<8x128xf32>
    %c0_8 = arith.constant 0 : index
    %c0_9 = arith.constant 0 : index
    %57 = vector.load %arg4[%c0_8, %c0_9] : memref<1x128xf32, #tpu.memory_space<vmem>>, vector<1x128xf32>
    %58 = vector.broadcast %57 : vector<1x128xf32> to vector<8x128xf32>
    %59 = arith.addf %56, %58 : vector<8x128xf32>
    %cst_10 = arith.constant 0.000000e+00 : f32
    %60 = vector.broadcast %cst_10 : f32 to vector<8x128xf32>
    %61 = arith.maximumf %59, %60 : vector<8x128xf32>
    %c0_11 = arith.constant 0 : index
    %c0_12 = arith.constant 0 : index
    %62 = vector.load %arg5[%c0_11, %c0_12] : memref<128x128xf32, #tpu.memory_space<vmem>>, vector<128x128xf32>
    %cst_13 = arith.constant dense<0.000000e+00> : vector<8x128xf32>
    %63 = tpu.matmul %61, %62, %cst_13 {dimension_numbers = #tpu.dot_dimension_numbers<[1], [0], [0], [1], [0, 0, 1, 1], [], []>} : vector<8x128xf32>, vector<128x128xf32>, vector<8x128xf32> -> vector<8x128xf32>
    %c0_14 = arith.constant 0 : index
    %c0_15 = arith.constant 0 : index
    %64 = vector.load %arg6[%c0_14, %c0_15] : memref<1x128xf32, #tpu.memory_space<vmem>>, vector<1x128xf32>
    %65 = vector.broadcast %64 : vector<1x128xf32> to vector<8x128xf32>
    %66 = arith.addf %63, %65 : vector<8x128xf32>
    %67 = arith.negf %66 : vector<8x128xf32>
    %68 = math.exp %67 : vector<8x128xf32>
    %cst_16 = arith.constant 1.000000e+00 : f32
    %69 = vector.broadcast %cst_16 : f32 to vector<8x128xf32>
    %70 = arith.addf %69, %68 : vector<8x128xf32>
    %71 = arith.divf %69, %70 : vector<8x128xf32>
    %c0_17 = arith.constant 0 : index
    %c0_18 = arith.constant 0 : index
    %72 = vector.load %arg7[%c0_17, %c0_18] : memref<8x128xf32, #tpu.memory_space<vmem>>, vector<8x128xf32>
    tpu.vector_store %arg7[%c0_17, %c0_18], %71 {strides = array<i32>} : memref<8x128xf32, #tpu.memory_space<vmem>>, vector<8x128xf32>,
    return
  }
  func.func @transform_0(%arg0: i32) -> (i32, i32) {
    %c0_i32 = arith.constant 0 : i32
    %c0_i32_0 = arith.constant 0 : i32
    return %arg0, %c0_i32 : i32, i32
  }
  func.func @transform_1(%arg0: i32) -> (i32, i32) {
    %c0_i32 = arith.constant 0 : i32
    %c0_i32_0 = arith.constant 0 : i32
    %c0_i32_1 = arith.constant 0 : i32
    return %c0_i32, %c0_i32_0 : i32, i32
  }
  func.func @transform_2(%arg0: i32) -> (i32, i32) {
    %c0_i32 = arith.constant 0 : i32
    %c0_i32_0 = arith.constant 0 : i32
    %c0_i32_1 = arith.constant 0 : i32
    return %c0_i32, %c0_i32_0 : i32, i32
  }
  func.func @transform_3(%arg0: i32) -> (i32, i32) {
    %c0_i32 = arith.constant 0 : i32
    %c0_i32_0 = arith.constant 0 : i32
    %c0_i32_1 = arith.constant 0 : i32
    return %c0_i32, %c0_i32_0 : i32, i32
  }
  func.func @transform_4(%arg0: i32) -> (i32, i32) {
    %c0_i32 = arith.constant 0 : i32
    %c0_i32_0 = arith.constant 0 : i32
    %c0_i32_1 = arith.constant 0 : i32
    return %c0_i32, %c0_i32_0 : i32, i32
  }
  func.func @transform_5(%arg0: i32) -> (i32, i32) {
    %c0_i32 = arith.constant 0 : i32
    %c0_i32_0 = arith.constant 0 : i32
    %c0_i32_1 = arith.constant 0 : i32
    return %c0_i32, %c0_i32_0 : i32, i32
  }
  func.func @transform_6(%arg0: i32) -> (i32, i32) {
    %c0_i32 = arith.constant 0 : i32
    %c0_i32_0 = arith.constant 0 : i32
    return %arg0, %c0_i32 : i32, i32
  }
}

</mosaic_0001>

<llo_original>
// kernel: _nlp_forward_impl.1
$region0: #{_nlp_forward_impl.1}
  #allocation0 [shape = 'u32[]', space=smem, size = 0x4, offset = 0x4, fixed_abs, tag = 'smem constant byte address 0x4 - core index']
  #allocation1 [shape = 'u32[144,128]{1,0:T(1,128)}', space=vmem, size = 0x12000, scoped, tag = 'internal scratch']
  %s0 = inlined_call_operand.vmem [shape: s32[8,8], index: 0, kind: input, shape index: {}]
  %s1 = inlined_call_operand.hbm [shape: f32[128,128], index: 1, kind: input, shape index: {}]
  %s2 = inlined_call_operand.hbm [shape: f32[128,128], index: 2, kind: input, shape index: {}]
  %s3 = inlined_call_operand.vmem [shape: f32[1,128], index: 3, kind: input, shape index: {}]
  %s4 = inlined_call_operand.hbm [shape: f32[128,128], index: 4, kind: input, shape index: {}]
  %s5 = inlined_call_operand.vmem [shape: f32[1,128], index: 5, kind: input, shape index: {}]
  %s6 = inlined_call_operand.hbm [shape: f32[8,128], index: 6, kind: output, shape index: {}]
  %s7 = sld [smem:[#allocation0]]
  $region46: #{_nlp_forward_impl.1} parent=0
    _
  %s9 = ssub.s32 1, %s7
  %s10 = scalar_select 0, %s9, %s7
  $region1: #{_nlp_forward_impl.1} parent=0
    #allocation2 [shape = 'u8[65536]{0}', space=vmem, size = 0x10000, scoped, tag = 'input window, operand 1, single buffered']
    #allocation3 [shape = 's32[1]{0}', space=sflag, size = 0x4, scoped, tag = 'scoped memory for _nlp_forward_impl.1']
    #allocation4 [shape = 's32[1]{0}', space=sflag, size = 0x4, scoped, tag = 'scoped memory for _nlp_forward_impl.1']
    #allocation5 [shape = 'u8[65536]{0}', space=vmem, size = 0x10000, scoped, tag = 'input window, operand 2, single buffered']
    #allocation6 [shape = 's32[1]{0}', space=sflag, size = 0x4, scoped, tag = 'scoped memory for _nlp_forward_impl.1']
    #allocation7 [shape = 'u8[65536]{0}', space=vmem, size = 0x10000, scoped, tag = 'input window, operand 4, single buffered']
    #allocation8 [shape = 'u8[4096]{0}', space=vmem, size = 0x1000, scoped, tag = 'output window, operand 0, single buffered']
    %11 = vsyncpa [#allocation3], 0
    %12 = vsyncpa [#allocation6], 0
    %13 = vsyncpa [#allocation4], 0
    // Predicated region
    $region2: #{_nlp_forward_impl.1} parent=1 // pred_check
      _
    $region3: #{_nlp_forward_impl.1} parent=1 // pred_check_branch
      %15 = sbr.rel (0) target = $region5
    $region4: #{_nlp_forward_impl.1} parent=1 // pred_region
      _
    $region5: #{_nlp_forward_impl.1} parent=1 // pred_fallthru
      _
    // Predicated region
    $region6: #{_nlp_forward_impl.1} parent=1 // pred_check
      _
    $region7: #{_nlp_forward_impl.1} parent=1 // pred_check_branch
      %17 = sbr.rel (0) target = $region9
    $region8: #{_nlp_forward_impl.1} parent=1 // pred_region
      %s19 = ssub.s32 2048, 2048
      %20 = vsyncadd [#allocation3], %s19
      %s21 = sshll.u32 [#allocation2], 4
      %s22 = int_to_ptr.vmem [resolvable:$true] %s21
      %27 = dma.hbm_to_vmem [thread:$0]  %s1, 2048, %s22, [#allocation3], 128, 128, 8
    $region9: #{_nlp_forward_impl.1} parent=1 // pred_fallthru
      _
    // Predicated region
    $region10: #{_nlp_forward_impl.1} parent=1 // pred_check
      _
    $region11: #{_nlp_forward_impl.1} parent=1 // pred_check_branch
      %29 = sbr.rel (0) target = $region13
    $region12: #{_nlp_forward_impl.1} parent=1 // pred_region
      %s31 = ssub.s32 2048, 2048
      %32 = vsyncadd [#allocation6], %s31
      %s33 = sshll.u32 [#allocation5], 4
      %s34 = int_to_ptr.vmem [resolvable:$true] %s33
      %39 = dma.hbm_to_vmem [thread:$0]  %s2, 2048, %s34, [#allocation6], 128, 128, 8
    $region13: #{_nlp_forward_impl.1} parent=1 // pred_fallthru
      _
    // Predicated region
    $region14: #{_nlp_forward_impl.1} parent=1 // pred_check
      _
    $region15: #{_nlp_forward_impl.1} parent=1 // pred_check_branch
      %41 = sbr.rel (0) target = $region17
    $region16: #{_nlp_forward_impl.1} parent=1 // pred_region
      _
    $region17: #{_nlp_forward_impl.1} parent=1 // pred_fallthru
      _
    // Predicated region
    $region18: #{_nlp_forward_impl.1} parent=1 // pred_check
      _
    $region19: #{_nlp_forward_impl.1} parent=1 // pred_check_branch
      %43 = sbr.rel (0) target = $region21
    $region20: #{_nlp_forward_impl.1} parent=1 // pred_region
      %s45 = ssub.s32 2048, 2048
      %46 = vsyncadd [#allocation6], %s45
      %s47 = sshll.u32 [#allocation7], 4
      %s48 = int_to_ptr.vmem [resolvable:$true] %s47
      %53 = dma.hbm_to_vmem [thread:$0]  %s4, 2048, %s48, [#allocation6], 128, 128, 8
    $region21: #{_nlp_forward_impl.1} parent=1 // pred_fallthru
      _
    // Predicated region
    $region22: #{_nlp_forward_impl.1} parent=1 // pred_check
      _
    $region23: #{_nlp_forward_impl.1} parent=1 // pred_check_branch
      %55 = sbr.rel (0) target = $region25
    $region24: #{_nlp_forward_impl.1} parent=1 // pred_region
      _
    $region25: #{_nlp_forward_impl.1} parent=1 // pred_fallthru
      _
    // Predicated region
    $region26: #{_nlp_forward_impl.1} parent=1 // pred_check
      _
    $region27: #{_nlp_forward_impl.1} parent=1 // pred_check_branch
      %57 = sbr.rel (0) target = $region29
    $region28: #{_nlp_forward_impl.1} parent=1 // pred_region
      %58 = dma.done [#allocation3], 2048
    $region29: #{_nlp_forward_impl.1} parent=1 // pred_fallthru
      _
    // Predicated region
    $region30: #{_nlp_forward_impl.1} parent=1 // pred_check
      _
    $region31: #{_nlp_forward_impl.1} parent=1 // pred_check_branch
      %60 = sbr.rel (0) target = $region33
    $region32: #{_nlp_forward_impl.1} parent=1 // pred_region
      %61 = dma.done [#allocation6], 2048
    $region33: #{_nlp_forward_impl.1} parent=1 // pred_fallthru
      _
    // Predicated region
    $region34: #{_nlp_forward_impl.1} parent=1 // pred_check
      _
    $region35: #{_nlp_forward_impl.1} parent=1 // pred_check_branch
      %63 = sbr.rel (0) target = $region37
    $region36: #{_nlp_forward_impl.1} parent=1 // pred_region
      %64 = dma.done [#allocation6], 2048
    $region37: #{_nlp_forward_impl.1} parent=1 // pred_fallthru
      _
    %v65 = vld [vmem:[%s0] sm:$0xff]
    %v66 = vlaneseq
    %v67 = vand.u32 %v66, 127
    %68 = vset.pattern.permute.xlu0 0
    %69 = vperm.xlu0 %68, %v65
    %v70 = vpop.permute.xlu0 %69
    %vm71 = vcmp.eq.s32.totalorder %v70, %v67
    %v72 = vsel %vm71, 1, 0
    %v73 = vcvt.s32.f32 %v72
    %v74 = vadd.f32 %v73, 0.0
    %75 = vset.pattern.permute.xlu0 1
    %76 = vperm.xlu0 %75, %v65
    %v77 = vpop.permute.xlu0 %76
    %vm78 = vcmp.eq.s32.totalorder %v77, %v67
    %v79 = vsel %vm78, 1, 0
    %v80 = vcvt.s32.f32 %v79
    %v81 = vadd.f32 %v74, %v80
    %82 = vset.pattern.permute.xlu0 2
    %83 = vperm.xlu0 %82, %v65
    %v84 = vpop.permute.xlu0 %83
    %vm85 = vcmp.eq.s32.totalorder %v84, %v67
    %v86 = vsel %vm85, 1, 0
    %v87 = vcvt.s32.f32 %v86
    %v88 = vadd.f32 %v81, %v87
    %89 = vset.pattern.permute.xlu0 3
    %90 = vperm.xlu0 %89, %v65
    %v91 = vpop.permute.xlu0 %90
    %vm92 = vcmp.eq.s32.totalorder %v91, %v67
    %v93 = vsel %vm92, 1, 0
    %v94 = vcvt.s32.f32 %v93
    %v95 = vadd.f32 %v88, %v94
    %96 = vset.pattern.permute.xlu0 4
    %97 = vperm.xlu0 %96, %v65
    %v98 = vpop.permute.xlu0 %97
    %vm99 = vcmp.eq.s32.totalorder %v98, %v67
    %v100 = vsel %vm99, 1, 0
    %v101 = vcvt.s32.f32 %v100
    %v102 = vadd.f32 %v95, %v101
    %103 = vset.pattern.permute.xlu0 5
    %104 = vperm.xlu0 %103, %v65
    %v105 = vpop.permute.xlu0 %104
    %vm106 = vcmp.eq.s32.totalorder %v105, %v67
    %v107 = vsel %vm106, 1, 0
    %v108 = vcvt.s32.f32 %v107
    %v109 = vadd.f32 %v102, %v108
    %110 = vset.pattern.permute.xlu0 6
    %111 = vperm.xlu0 %110, %v65
    %v112 = vpop.permute.xlu0 %111
    %vm113 = vcmp.eq.s32.totalorder %v112, %v67
    %v114 = vsel %vm113, 1, 0
    %v115 = vcvt.s32.f32 %v114
    %v116 = vadd.f32 %v109, %v115
    %117 = vset.pattern.permute.xlu0 7
    %118 = vperm.xlu0 %117, %v65
    %v119 = vpop.permute.xlu0 %118
    %vm120 = vcmp.eq.s32.totalorder %v119, %v67
    %v121 = vsel %vm120, 1, 0
    %v122 = vcvt.s32.f32 %v121
    %v123 = vadd.f32 %v116, %v122
    %v124 = vld [vmem:[#allocation2] sm:$0xff]
    %v125 = vld [vmem:[#allocation2 + $0x8] sm:$0xff]
    %v126 = vld [vmem:[#allocation2 + $0x10] sm:$0xff]
    %v127 = vld [vmem:[#allocation2 + $0x18] sm:$0xff]
    %v128 = vld [vmem:[#allocation2 + $0x20] sm:$0xff]
    %v129 = vld [vmem:[#allocation2 + $0x28] sm:$0xff]
    %v130 = vld [vmem:[#allocation2 + $0x30] sm:$0xff]
    %v131 = vld [vmem:[#allocation2 + $0x38] sm:$0xff]
    %v132 = vld [vmem:[#allocation2 + $0x40] sm:$0xff]
    %v133 = vld [vmem:[#allocation2 + $0x48] sm:$0xff]
    %v134 = vld [vmem:[#allocation2 + $0x50] sm:$0xff]
    %v135 = vld [vmem:[#allocation2 + $0x58] sm:$0xff]
    %v136 = vld [vmem:[#allocation2 + $0x60] sm:$0xff]
    %v137 = vld [vmem:[#allocation2 + $0x68] sm:$0xff]
    %v138 = vld [vmem:[#allocation2 + $0x70] sm:$0xff]
    %v139 = vld [vmem:[#allocation2 + $0x78] sm:$0xff]
    %140 = vmatprep.subr.mxu0 0.0
    %141 = vmatpush1.msra.mxu0 %v124
    %142 = vmatprep.subr.mxu0 0.0
    %143 = vmatpush1.msra.mxu0 %v125
    %144 = vmatprep.subr.mxu0 0.0
    %145 = vmatpush1.msra.mxu0 %v126
    %146 = vmatprep.subr.mxu0 0.0
    %147 = vmatpush1.msra.mxu0 %v127
    %148 = vmatprep.subr.mxu0 0.0
    %149 = vmatpush1.msra.mxu0 %v128
    %150 = vmatprep.subr.mxu0 0.0
    %151 = vmatpush1.msra.mxu0 %v129
    %152 = vmatprep.subr.mxu0 0.0
    %153 = vmatpush1.msra.mxu0 %v130
    %154 = vmatprep.subr.mxu0 0.0
    %155 = vmatpush1.msra.mxu0 %v131
    %156 = vmatprep.subr.mxu0 0.0
    %157 = vmatpush1.msra.mxu0 %v132
    %158 = vmatprep.subr.mxu0 0.0
    %159 = vmatpush1.msra.mxu0 %v133
    %160 = vmatprep.subr.mxu0 0.0
    %161 = vmatpush1.msra.mxu0 %v134
    %162 = vmatprep.subr.mxu0 0.0
    %163 = vmatpush1.msra.mxu0 %v135
    %164 = vmatprep.subr.mxu0 0.0
    %165 = vmatpush1.msra.mxu0 %v136
    %166 = vmatprep.subr.mxu0 0.0
    %167 = vmatpush1.msra.mxu0 %v137
    %168 = vmatprep.subr.mxu0 0.0
    %169 = vmatpush1.msra.mxu0 %v138
    %170 = vmatprep.subr.mxu0 0.0
    %171 = vmatpush1.msra.mxu0 %v139
    %172 = vmatprep.subr.mxu0 0.0
    %173 = vmatpush1.msra.mxu0 0.0
    %174 = vmatprep.subr.mxu0 0.0
    %175 = vmatpush1.msra.mxu0 0.0
    %176 = vmatprep.subr.mxu0 0.0
    %177 = vmatpush1.msra.mxu0 0.0
    %178 = vmatprep.subr.mxu0 0.0
    %179 = vmatpush1.msra.mxu0 0.0
    %180 = vmatprep.subr.mxu0 0.0
    %181 = vmatpush1.msra.mxu0 0.0
    %182 = vmatprep.subr.mxu0 0.0
    %183 = vmatpush1.msra.mxu0 0.0
    %184 = vmatprep.subr.mxu0 0.0
    %185 = vmatpush1.msra.mxu0 0.0
    %186 = vmatprep.subr.mxu0 0.0
    %187 = vmatpush1.msra.mxu0 0.0
    %188 = vmatprep.subr.mxu0 0.0
    %189 = vmatpush1.msra.mxu0 0.0
    %190 = vmatprep.subr.mxu0 0.0
    %191 = vmatpush1.msra.mxu0 0.0
    %192 = vmatprep.subr.mxu0 0.0
    %193 = vmatpush1.msra.mxu0 0.0
    %194 = vmatprep.subr.mxu0 0.0
    %195 = vmatpush1.msra.mxu0 0.0
    %196 = vmatprep.subr.mxu0 0.0
    %197 = vmatpush1.msra.mxu0 0.0
    %198 = vmatprep.subr.mxu0 0.0
    %199 = vmatpush1.msra.mxu0 0.0
    %200 = vmatprep.subr.mxu0 0.0
    %201 = vmatpush1.msra.mxu0 0.0
    %202 = vmatprep.subr.mxu0 0.0
    %203 = vmatpush1.msra.mxu0 0.0
    %204 = vmatprep.mubr.f32.mxu0 0.0
    %205 = vmatmul.mubr.f32.gmra.mrb[0].mxu0 %v123
    %v206 = vpop.f32.mrb[0].mxu0
    %v207 = vadd.f32 0.0, %v206
    %v208 = vpop.f32.mrb[0].mxu0
    %209 = vdwg.mxu0
    %v210 = vmul.f32 %v207, 0.125
    %v211 = vld [vmem:[#allocation5] sm:$0xff]
    %v212 = vld [vmem:[#allocation5 + $0x8] sm:$0xff]
    %v213 = vld [vmem:[#allocation5 + $0x10] sm:$0xff]
    %v214 = vld [vmem:[#allocation5 + $0x18] sm:$0xff]
    %v215 = vld [vmem:[#allocation5 + $0x20] sm:$0xff]
    %v216 = vld [vmem:[#allocation5 + $0x28] sm:$0xff]
    %v217 = vld [vmem:[#allocation5 + $0x30] sm:$0xff]
    %v218 = vld [vmem:[#allocation5 + $0x38] sm:$0xff]
    %v219 = vld [vmem:[#allocation5 + $0x40] sm:$0xff]
    %v220 = vld [vmem:[#allocation5 + $0x48] sm:$0xff]
    %v221 = vld [vmem:[#allocation5 + $0x50] sm:$0xff]
    %v222 = vld [vmem:[#allocation5 + $0x58] sm:$0xff]
    %v223 = vld [vmem:[#allocation5 + $0x60] sm:$0xff]
    %v224 = vld [vmem:[#allocation5 + $0x68] sm:$0xff]
    %v225 = vld [vmem:[#allocation5 + $0x70] sm:$0xff]
    %v226 = vld [vmem:[#allocation5 + $0x78] sm:$0xff]
    %v227 = vld [vmem:[%s3] sm:$0x1]
    %v229 = vlaneseq
    %v230 = vshrl.u32 %v229, 7
    %v231 = vsub.s32 0, %v230
    %v232 = vrot.slane %v227, %v231
    %234 = vmatprep.subr.mxu0 0.0
    %235 = vmatpush1.msra.mxu0 %v211
    %236 = vmatprep.subr.mxu0 0.0
    %237 = vmatpush1.msra.mxu0 %v212
    %238 = vmatprep.subr.mxu0 0.0
    %239 = vmatpush1.msra.mxu0 %v213
    %240 = vmatprep.subr.mxu0 0.0
    %241 = vmatpush1.msra.mxu0 %v214
    %242 = vmatprep.subr.mxu0 0.0
    %243 = vmatpush1.msra.mxu0 %v215
    %244 = vmatprep.subr.mxu0 0.0
    %245 = vmatpush1.msra.mxu0 %v216
    %246 = vmatprep.subr.mxu0 0.0
    %247 = vmatpush1.msra.mxu0 %v217
    %248 = vmatprep.subr.mxu0 0.0
    %249 = vmatpush1.msra.mxu0 %v218
    %250 = vmatprep.subr.mxu0 0.0
    %251 = vmatpush1.msra.mxu0 %v219
    %252 = vmatprep.subr.mxu0 0.0
    %253 = vmatpush1.msra.mxu0 %v220
    %254 = vmatprep.subr.mxu0 0.0
    %255 = vmatpush1.msra.mxu0 %v221
    %256 = vmatprep.subr.mxu0 0.0
    %257 = vmatpush1.msra.mxu0 %v222
    %258 = vmatprep.subr.mxu0 0.0
    %259 = vmatpush1.msra.mxu0 %v223
    %260 = vmatprep.subr.mxu0 0.0
    %261 = vmatpush1.msra.mxu0 %v224
    %262 = vmatprep.subr.mxu0 0.0
    %263 = vmatpush1.msra.mxu0 %v225
    %264 = vmatprep.subr.mxu0 0.0
    %265 = vmatpush1.msra.mxu0 %v226
    %266 = vmatprep.subr.mxu0 0.0
    %267 = vmatpush1.msra.mxu0 0.0
    %268 = vmatprep.subr.mxu0 0.0
    %269 = vmatpush1.msra.mxu0 0.0
    %270 = vmatprep.subr.mxu0 0.0
    %271 = vmatpush1.msra.mxu0 0.0
    %272 = vmatprep.subr.mxu0 0.0
    %273 = vmatpush1.msra.mxu0 0.0
    %274 = vmatprep.subr.mxu0 0.0
    %275 = vmatpush1.msra.mxu0 0.0
    %276 = vmatprep.subr.mxu0 0.0
    %277 = vmatpush1.msra.mxu0 0.0
    %278 = vmatprep.subr.mxu0 0.0
    %279 = vmatpush1.msra.mxu0 0.0
    %280 = vmatprep.subr.mxu0 0.0
    %281 = vmatpush1.msra.mxu0 0.0
    %282 = vmatprep.subr.mxu0 0.0
    %283 = vmatpush1.msra.mxu0 0.0
    %284 = vmatprep.subr.mxu0 0.0
    %285 = vmatpush1.msra.mxu0 0.0
    %286 = vmatprep.subr.mxu0 0.0
    %287 = vmatpush1.msra.mxu0 0.0
    %288 = vmatprep.subr.mxu0 0.0
    %289 = vmatpush1.msra.mxu0 0.0
    %290 = vmatprep.subr.mxu0 0.0
    %291 = vmatpush1.msra.mxu0 0.0
    %292 = vmatprep.subr.mxu0 0.0
    %293 = vmatpush1.msra.mxu0 0.0
    %294 = vmatprep.subr.mxu0 0.0
    %295 = vmatpush1.msra.mxu0 0.0
    %296 = vmatprep.subr.mxu0 0.0
    %297 = vmatpush1.msra.mxu0 0.0
    %298 = vmatprep.mubr.f32.mxu0 0.0
    %299 = vmatmul.mubr.f32.gmra.mrb[0].mxu0 %v210
    %v300 = vpop.f32.mrb[0].mxu0
    %v301 = vadd.f32 %v232, %v300
    %v302 = vpop.f32.mrb[0].mxu0
    %303 = vdwg.mxu0
    %v304 = vmax.f32 %v301, 0.0
    %v305 = vld [vmem:[#allocation7] sm:$0xff]
    %v306 = vld [vmem:[#allocation7 + $0x8] sm:$0xff]
    %v307 = vld [vmem:[#allocation7 + $0x10] sm:$0xff]
    %v308 = vld [vmem:[#allocation7 + $0x18] sm:$0xff]
    %v309 = vld [vmem:[#allocation7 + $0x20] sm:$0xff]
    %v310 = vld [vmem:[#allocation7 + $0x28] sm:$0xff]
    %v311 = vld [vmem:[#allocation7 + $0x30] sm:$0xff]
    %v312 = vld [vmem:[#allocation7 + $0x38] sm:$0xff]
    %v313 = vld [vmem:[#allocation7 + $0x40] sm:$0xff]
    %v314 = vld [vmem:[#allocation7 + $0x48] sm:$0xff]
    %v315 = vld [vmem:[#allocation7 + $0x50] sm:$0xff]
    %v316 = vld [vmem:[#allocation7 + $0x58] sm:$0xff]
    %v317 = vld [vmem:[#allocation7 + $0x60] sm:$0xff]
    %v318 = vld [vmem:[#allocation7 + $0x68] sm:$0xff]
    %v319 = vld [vmem:[#allocation7 + $0x70] sm:$0xff]
    %v320 = vld [vmem:[#allocation7 + $0x78] sm:$0xff]
    %v321 = vld [vmem:[%s5] sm:$0x1]
    %v323 = vlaneseq
    %v324 = vshrl.u32 %v323, 7
    %v325 = vsub.s32 0, %v324
    %v326 = vrot.slane %v321, %v325
    %328 = vmatprep.subr.mxu0 0.0
    %329 = vmatpush1.msra.mxu0 %v305
    %330 = vmatprep.subr.mxu0 0.0
    %331 = vmatpush1.msra.mxu0 %v306
    %332 = vmatprep.subr.mxu0 0.0
    %333 = vmatpush1.msra.mxu0 %v307
    %334 = vmatprep.subr.mxu0 0.0
    %335 = vmatpush1.msra.mxu0 %v308
    %336 = vmatprep.subr.mxu0 0.0
    %337 = vmatpush1.msra.mxu0 %v309
    %338 = vmatprep.subr.mxu0 0.0
    %339 = vmatpush1.msra.mxu0 %v310
    %340 = vmatprep.subr.mxu0 0.0
    %341 = vmatpush1.msra.mxu0 %v311
    %342 = vmatprep.subr.mxu0 0.0
    %343 = vmatpush1.msra.mxu0 %v312
    %344 = vmatprep.subr.mxu0 0.0
    %345 = vmatpush1.msra.mxu0 %v313
    %346 = vmatprep.subr.mxu0 0.0
    %347 = vmatpush1.msra.mxu0 %v314
    %348 = vmatprep.subr.mxu0 0.0
    %349 = vmatpush1.msra.mxu0 %v315
    %350 = vmatprep.subr.mxu0 0.0
    %351 = vmatpush1.msra.mxu0 %v316
    %352 = vmatprep.subr.mxu0 0.0
    %353 = vmatpush1.msra.mxu0 %v317
    %354 = vmatprep.subr.mxu0 0.0
    %355 = vmatpush1.msra.mxu0 %v318
    %356 = vmatprep.subr.mxu0 0.0
    %357 = vmatpush1.msra.mxu0 %v319
    %358 = vmatprep.subr.mxu0 0.0
    %359 = vmatpush1.msra.mxu0 %v320
    %360 = vmatprep.subr.mxu0 0.0
    %361 = vmatpush1.msra.mxu0 0.0
    %362 = vmatprep.subr.mxu0 0.0
    %363 = vmatpush1.msra.mxu0 0.0
    %364 = vmatprep.subr.mxu0 0.0
    %365 = vmatpush1.msra.mxu0 0.0
    %366 = vmatprep.subr.mxu0 0.0
    %367 = vmatpush1.msra.mxu0 0.0
    %368 = vmatprep.subr.mxu0 0.0
    %369 = vmatpush1.msra.mxu0 0.0
    %370 = vmatprep.subr.mxu0 0.0
    %371 = vmatpush1.msra.mxu0 0.0
    %372 = vmatprep.subr.mxu0 0.0
    %373 = vmatpush1.msra.mxu0 0.0
    %374 = vmatprep.subr.mxu0 0.0
    %375 = vmatpush1.msra.mxu0 0.0
    %376 = vmatprep.subr.mxu0 0.0
    %377 = vmatpush1.msra.mxu0 0.0
    %378 = vmatprep.subr.mxu0 0.0
    %379 = vmatpush1.msra.mxu0 0.0
    %380 = vmatprep.subr.mxu0 0.0
    %381 = vmatpush1.msra.mxu0 0.0
    %382 = vmatprep.subr.mxu0 0.0
    %383 = vmatpush1.msra.mxu0 0.0
    %384 = vmatprep.subr.mxu0 0.0
    %385 = vmatpush1.msra.mxu0 0.0
    %386 = vmatprep.subr.mxu0 0.0
    %387 = vmatpush1.msra.mxu0 0.0
    %388 = vmatprep.subr.mxu0 0.0
    %389 = vmatpush1.msra.mxu0 0.0
    %390 = vmatprep.subr.mxu0 0.0
    %391 = vmatpush1.msra.mxu0 0.0
    %392 = vmatprep.mubr.f32.mxu0 0.0
    %393 = vmatmul.mubr.f32.gmra.mrb[0].mxu0 %v304
    %v394 = vpop.f32.mrb[0].mxu0
    %v395 = vadd.f32 %v326, %v394
    %v396 = vpop.f32.mrb[0].mxu0
    %397 = vdwg.mxu0
    %v398 = vxor.u32 %v395, 2147483648
    %v399 = vmul.f32 %v398, 1.442695
    %v400 = vpow.pop %v399
    %v401 = vadd.f32 %v400, 1.0
    %v402 = vrcp.pop %v401
    %v403 = vmul.f32 1.0, %v402
    %404 = vst [vmem:[#allocation8] sm:$0xff] %v403
    // Predicated region
    $region38: #{_nlp_forward_impl.1} parent=1 // pred_check
      _
    $region39: #{_nlp_forward_impl.1} parent=1 // pred_check_branch
      %406 = sbr.rel (0) target = $region41
    $region40: #{_nlp_forward_impl.1} parent=1 // pred_region
      %s408 = ssub.s32 128, 128
      %409 = vsyncadd [#allocation4], %s408
      %s411 = sshll.u32 [#allocation8], 4
      %s412 = int_to_ptr.vmem [resolvable:$true] %s411
      %414 = dma.vmem_to_hbm [thread:$0]  %s412, 128, %s6, [#allocation4]
    $region41: #{_nlp_forward_impl.1} parent=1 // pred_fallthru
      _
    // Predicated region
    $region42: #{_nlp_forward_impl.1} parent=1 // pred_check
      _
    $region43: #{_nlp_forward_impl.1} parent=1 // pred_check_branch
      %416 = sbr.rel (0) target = $region45
    $region44: #{_nlp_forward_impl.1} parent=1 // pred_region
      %417 = dma.done [#allocation4], 128
    $region45: #{_nlp_forward_impl.1} parent=1 // pred_fallthru
      _
    %418 = vsyncpa [#allocation3], 1
    %419 = vsyncpa [#allocation6], 1
    %420 = vsyncpa [#allocation4], 1

// kernel: _nlp_forward_impl.1
$region0: #{_nlp_forward_impl.1}
  #allocation0 [shape = 'u32[]', space=smem, size = 0x4, offset = 0x4, fixed_abs, tag = 'smem constant byte address 0x4 - core index']
  #allocation1 [shape = 'u32[144,128]{1,0:T(1,128)}', space=vmem, size = 0x12000, scoped, tag = 'internal scratch']
  %s0 = inlined_call_operand.vmem [shape: s32[8,8], index: 0, kind: input, shape index: {}]
  %s1 = inlined_call_operand.hbm [shape: f32[128,128], index: 1, kind: input, shape index: {}]
  %s2 = inlined_call_operand.hbm [shape: f32[128,128], index: 2, kind: input, shape index: {}]
  %s3 = inlined_call_operand.vmem [shape: f32[1,128], index: 3, kind: input, shape index: {}]
  %s4 = inlined_call_operand.hbm [shape: f32[128,128], index: 4, kind: input, shape index: {}]
  %s5 = inlined_call_operand.vmem [shape: f32[1,128], index: 5, kind: input, shape index: {}]
  %s6 = inlined_call_operand.hbm [shape: f32[8,128], index: 6, kind: output, shape index: {}]
  %s7 = sld [smem:[#allocation0]]
  $region46: #{_nlp_forward_impl.1} parent=0
    _
  %s9 = ssub.s32 1, %s7
  %s10 = scalar_select 0, %s9, %s7
  $region1: #{_nlp_forward_impl.1} parent=0
    #allocation2 [shape = 'u8[65536]{0}', space=vmem, size = 0x10000, scoped, tag = 'input window, operand 1, single buffered']
    #allocation3 [shape = 's32[1]{0}', space=sflag, size = 0x4, scoped, tag = 'scoped memory for _nlp_forward_impl.1']
    #allocation4 [shape = 's32[1]{0}', space=sflag, size = 0x4, scoped, tag = 'scoped memory for _nlp_forward_impl.1']
    #allocation5 [shape = 'u8[65536]{0}', space=vmem, size = 0x10000, scoped, tag = 'input window, operand 2, single buffered']
    #allocation6 [shape = 's32[1]{0}', space=sflag, size = 0x4, scoped, tag = 'scoped memory for _nlp_forward_impl.1']
    #allocation7 [shape = 'u8[65536]{0}', space=vmem, size = 0x10000, scoped, tag = 'input window, operand 4, single buffered']
    #allocation8 [shape = 'u8[4096]{0}', space=vmem, size = 0x1000, scoped, tag = 'output window, operand 0, single buffered']
    %11 = vsyncpa [#allocation3], 0
    %12 = vsyncpa [#allocation6], 0
    %13 = vsyncpa [#allocation4], 0
    // Predicated region
    $region2: #{_nlp_forward_impl.1} parent=1 // pred_check
      _
    $region3: #{_nlp_forward_impl.1} parent=1 // pred_check_branch
      %15 = sbr.rel (0) target = $region5
    $region4: #{_nlp_forward_impl.1} parent=1 // pred_region
      _
    $region5: #{_nlp_forward_impl.1} parent=1 // pred_fallthru
      _
    // Predicated region
    $region6: #{_nlp_forward_impl.1} parent=1 // pred_check
      _
    $region7: #{_nlp_forward_impl.1} parent=1 // pred_check_branch
      %17 = sbr.rel (0) target = $region9
    $region8: #{_nlp_forward_impl.1} parent=1 // pred_region
      %s19 = ssub.s32 2048, 2048
      %20 = vsyncadd [#allocation3], %s19
      %s21 = sshll.u32 [#allocation2], 4
      %s22 = int_to_ptr.vmem [resolvable:$true] %s21
      %27 = dma.hbm_to_vmem [thread:$0]  %s1, 2048, %s22, [#allocation3], 128, 128, 8
    $region9: #{_nlp_forward_impl.1} parent=1 // pred_fallthru
      _
    // Predicated region
    $region10: #{_nlp_forward_impl.1} parent=1 // pred_check
      _
    $region11: #{_nlp_forward_impl.1} parent=1 // pred_check_branch
      %29 = sbr.rel (0) target = $region13
    $region12: #{_nlp_forward_impl.1} parent=1 // pred_region
      %s31 = ssub.s32 2048, 2048
      %32 = vsyncadd [#allocation6], %s31
      %s33 = sshll.u32 [#allocation5], 4
      %s34 = int_to_ptr.vmem [resolvable:$true] %s33
      %39 = dma.hbm_to_vmem [thread:$0]  %s2, 2048, %s34, [#allocation6], 128, 128, 8
    $region13: #{_nlp_forward_impl.1} parent=1 // pred_fallthru
      _
    // Predicated region
    $region14: #{_nlp_forward_impl.1} parent=1 // pred_check
      _
    $region15: #{_nlp_forward_impl.1} parent=1 // pred_check_branch
      %41 = sbr.rel (0) target = $region17
    $region16: #{_nlp_forward_impl.1} parent=1 // pred_region
      _
    $region17: #{_nlp_forward_impl.1} parent=1 // pred_fallthru
      _
    // Predicated region
    $region18: #{_nlp_forward_impl.1} parent=1 // pred_check
      _
    $region19: #{_nlp_forward_impl.1} parent=1 // pred_check_branch
      %43 = sbr.rel (0) target = $region21
    $region20: #{_nlp_forward_impl.1} parent=1 // pred_region
      %s45 = ssub.s32 2048, 2048
      %46 = vsyncadd [#allocation6], %s45
      %s47 = sshll.u32 [#allocation7], 4
      %s48 = int_to_ptr.vmem [resolvable:$true] %s47
      %53 = dma.hbm_to_vmem [thread:$0]  %s4, 2048, %s48, [#allocation6], 128, 128, 8
    $region21: #{_nlp_forward_impl.1} parent=1 // pred_fallthru
      _
    // Predicated region
    $region22: #{_nlp_forward_impl.1} parent=1 // pred_check
      _
    $region23: #{_nlp_forward_impl.1} parent=1 // pred_check_branch
      %55 = sbr.rel (0) target = $region25
    $region24: #{_nlp_forward_impl.1} parent=1 // pred_region
      _
    $region25: #{_nlp_forward_impl.1} parent=1 // pred_fallthru
      _
    // Predicated region
    $region26: #{_nlp_forward_impl.1} parent=1 // pred_check
      _
    $region27: #{_nlp_forward_impl.1} parent=1 // pred_check_branch
      %57 = sbr.rel (0) target = $region29
    $region28: #{_nlp_forward_impl.1} parent=1 // pred_region
      %58 = dma.done [#allocation3], 2048
    $region29: #{_nlp_forward_impl.1} parent=1 // pred_fallthru
      _
    // Predicated region
    $region30: #{_nlp_forward_impl.1} parent=1 // pred_check
      _
    $region31: #{_nlp_forward_impl.1} parent=1 // pred_check_branch
      %60 = sbr.rel (0) target = $region33
    $region32: #{_nlp_forward_impl.1} parent=1 // pred_region
      %61 = dma.done [#allocation6], 2048
    $region33: #{_nlp_forward_impl.1} parent=1 // pred_fallthru
      _
    // Predicated region
    $region34: #{_nlp_forward_impl.1} parent=1 // pred_check
      _
    $region35: #{_nlp_forward_impl.1} parent=1 // pred_check_branch
      %63 = sbr.rel (0) target = $region37
    $region36: #{_nlp_forward_impl.1} parent=1 // pred_region
      %64 = dma.done [#allocation6], 2048
    $region37: #{_nlp_forward_impl.1} parent=1 // pred_fallthru
      _
    %v65 = vld [vmem:[%s0] sm:$0xff]
    %v66 = vlaneseq
    %v67 = vand.u32 %v66, 127
    %68 = vset.pattern.permute.xlu0 0
    %69 = vperm.xlu0 %68, %v65
    %v70 = vpop.permute.xlu0 %69
    %vm71 = vcmp.eq.s32.totalorder %v70, %v67
    %v72 = vsel %vm71, 1, 0
    %v73 = vcvt.s32.f32 %v72
    %v74 = vadd.f32 %v73, 0.0
    %75 = vset.pattern.permute.xlu0 1
    %76 = vperm.xlu0 %75, %v65
    %v77 = vpop.permute.xlu0 %76
    %vm78 = vcmp.eq.s32.totalorder %v77, %v67
    %v79 = vsel %vm78, 1, 0
    %v80 = vcvt.s32.f32 %v79
    %v81 = vadd.f32 %v74, %v80
    %82 = vset.pattern.permute.xlu0 2
    %83 = vperm.xlu0 %82, %v65
    %v84 = vpop.permute.xlu0 %83
    %vm85 = vcmp.eq.s32.totalorder %v84, %v67
    %v86 = vsel %vm85, 1, 0
    %v87 = vcvt.s32.f32 %v86
    %v88 = vadd.f32 %v81, %v87
    %89 = vset.pattern.permute.xlu0 3
    %90 = vperm.xlu0 %89, %v65
    %v91 = vpop.permute.xlu0 %90
    %vm92 = vcmp.eq.s32.totalorder %v91, %v67
    %v93 = vsel %vm92, 1, 0
    %v94 = vcvt.s32.f32 %v93
    %v95 = vadd.f32 %v88, %v94
    %96 = vset.pattern.permute.xlu0 4
    %97 = vperm.xlu0 %96, %v65
    %v98 = vpop.permute.xlu0 %97
    %vm99 = vcmp.eq.s32.totalorder %v98, %v67
    %v100 = vsel %vm99, 1, 0
    %v101 = vcvt.s32.f32 %v100
    %v102 = vadd.f32 %v95, %v101
    %103 = vset.pattern.permute.xlu0 5
    %104 = vperm.xlu0 %103, %v65
    %v105 = vpop.permute.xlu0 %104
    %vm106 = vcmp.eq.s32.totalorder %v105, %v67
    %v107 = vsel %vm106, 1, 0
    %v108 = vcvt.s32.f32 %v107
    %v109 = vadd.f32 %v102, %v108
    %110 = vset.pattern.permute.xlu0 6
    %111 = vperm.xlu0 %110, %v65
    %v112 = vpop.permute.xlu0 %111
    %vm113 = vcmp.eq.s32.totalorder %v112, %v67
    %v114 = vsel %vm113, 1, 0
    %v115 = vcvt.s32.f32 %v114
    %v116 = vadd.f32 %v109, %v115
    %117 = vset.pattern.permute.xlu0 7
    %118 = vperm.xlu0 %117, %v65
    %v119 = vpop.permute.xlu0 %118
    %vm120 = vcmp.eq.s32.totalorder %v119, %v67
    %v121 = vsel %vm120, 1, 0
    %v122 = vcvt.s32.f32 %v121
    %v123 = vadd.f32 %v116, %v122
    %v124 = vld [vmem:[#allocation2] sm:$0xff]
    %v125 = vld [vmem:[#allocation2 + $0x8] sm:$0xff]
    %v126 = vld [vmem:[#allocation2 + $0x10] sm:$0xff]
    %v127 = vld [vmem:[#allocation2 + $0x18] sm:$0xff]
    %v128 = vld [vmem:[#allocation2 + $0x20] sm:$0xff]
    %v129 = vld [vmem:[#allocation2 + $0x28] sm:$0xff]
    %v130 = vld [vmem:[#allocation2 + $0x30] sm:$0xff]
    %v131 = vld [vmem:[#allocation2 + $0x38] sm:$0xff]
    %v132 = vld [vmem:[#allocation2 + $0x40] sm:$0xff]
    %v133 = vld [vmem:[#allocation2 + $0x48] sm:$0xff]
    %v134 = vld [vmem:[#allocation2 + $0x50] sm:$0xff]
    %v135 = vld [vmem:[#allocation2 + $0x58] sm:$0xff]
    %v136 = vld [vmem:[#allocation2 + $0x60] sm:$0xff]
    %v137 = vld [vmem:[#allocation2 + $0x68] sm:$0xff]
    %v138 = vld [vmem:[#allocation2 + $0x70] sm:$0xff]
    %v139 = vld [vmem:[#allocation2 + $0x78] sm:$0xff]
    %140 = vmatprep.subr.mxu0 0.0
    %141 = vmatpush1.msra.mxu0 %v124
    %142 = vmatprep.subr.mxu0 0.0
    %143 = vmatpush1.msra.mxu0 %v125
    %144 = vmatprep.subr.mxu0 0.0
    %145 = vmatpush1.msra.mxu0 %v126
    %146 = vmatprep.subr.mxu0 0.0
    %147 = vmatpush1.msra.mxu0 %v127
    %148 = vmatprep.subr.mxu0 0.0
    %149 = vmatpush1.msra.mxu0 %v128
    %150 = vmatprep.subr.mxu0 0.0
    %151 = vmatpush1.msra.mxu0 %v129
    %152 = vmatprep.subr.mxu0 0.0
    %153 = vmatpush1.msra.mxu0 %v130
    %154 = vmatprep.subr.mxu0 0.0
    %155 = vmatpush1.msra.mxu0 %v131
    %156 = vmatprep.subr.mxu0 0.0
    %157 = vmatpush1.msra.mxu0 %v132
    %158 = vmatprep.subr.mxu0 0.0
    %159 = vmatpush1.msra.mxu0 %v133
    %160 = vmatprep.subr.mxu0 0.0
    %161 = vmatpush1.msra.mxu0 %v134
    %162 = vmatprep.subr.mxu0 0.0
    %163 = vmatpush1.msra.mxu0 %v135
    %164 = vmatprep.subr.mxu0 0.0
    %165 = vmatpush1.msra.mxu0 %v136
    %166 = vmatprep.subr.mxu0 0.0
    %167 = vmatpush1.msra.mxu0 %v137
    %168 = vmatprep.subr.mxu0 0.0
    %169 = vmatpush1.msra.mxu0 %v138
    %170 = vmatprep.subr.mxu0 0.0
    %171 = vmatpush1.msra.mxu0 %v139
    %172 = vmatprep.subr.mxu0 0.0
    %173 = vmatpush1.msra.mxu0 0.0
    %174 = vmatprep.subr.mxu0 0.0
    %175 = vmatpush1.msra.mxu0 0.0
    %176 = vmatprep.subr.mxu0 0.0
    %177 = vmatpush1.msra.mxu0 0.0
    %178 = vmatprep.subr.mxu0 0.0
    %179 = vmatpush1.msra.mxu0 0.0
    %180 = vmatprep.subr.mxu0 0.0
    %181 = vmatpush1.msra.mxu0 0.0
    %182 = vmatprep.subr.mxu0 0.0
    %183 = vmatpush1.msra.mxu0 0.0
    %184 = vmatprep.subr.mxu0 0.0
    %185 = vmatpush1.msra.mxu0 0.0
    %186 = vmatprep.subr.mxu0 0.0
    %187 = vmatpush1.msra.mxu0 0.0
    %188 = vmatprep.subr.mxu0 0.0
    %189 = vmatpush1.msra.mxu0 0.0
    %190 = vmatprep.subr.mxu0 0.0
    %191 = vmatpush1.msra.mxu0 0.0
    %192 = vmatprep.subr.mxu0 0.0
    %193 = vmatpush1.msra.mxu0 0.0
    %194 = vmatprep.subr.mxu0 0.0
    %195 = vmatpush1.msra.mxu0 0.0
    %196 = vmatprep.subr.mxu0 0.0
    %197 = vmatpush1.msra.mxu0 0.0
    %198 = vmatprep.subr.mxu0 0.0
    %199 = vmatpush1.msra.mxu0 0.0
    %200 = vmatprep.subr.mxu0 0.0
    %201 = vmatpush1.msra.mxu0 0.0
    %202 = vmatprep.subr.mxu0 0.0
    %203 = vmatpush1.msra.mxu0 0.0
    %204 = vmatprep.mubr.f32.mxu0 0.0
    %205 = vmatmul.mubr.f32.gmra.mrb[0].mxu0 %v123
    %v206 = vpop.f32.mrb[0].mxu0
    %v207 = vadd.f32 0.0, %v206
    %v208 = vpop.f32.mrb[0].mxu0
    %209 = vdwg.mxu0
    %v210 = vmul.f32 %v207, 0.125
    %v211 = vld [vmem:[#allocation5] sm:$0xff]
    %v212 = vld [vmem:[#allocation5 + $0x8] sm:$0xff]
    %v213 = vld [vmem:[#allocation5 + $0x10] sm:$0xff]
    %v214 = vld [vmem:[#allocation5 + $0x18] sm:$0xff]
    %v215 = vld [vmem:[#allocation5 + $0x20] sm:$0xff]
    %v216 = vld [vmem:[#allocation5 + $0x28] sm:$0xff]
    %v217 = vld [vmem:[#allocation5 + $0x30] sm:$0xff]
    %v218 = vld [vmem:[#allocation5 + $0x38] sm:$0xff]
    %v219 = vld [vmem:[#allocation5 + $0x40] sm:$0xff]
    %v220 = vld [vmem:[#allocation5 + $0x48] sm:$0xff]
    %v221 = vld [vmem:[#allocation5 + $0x50] sm:$0xff]
    %v222 = vld [vmem:[#allocation5 + $0x58] sm:$0xff]
    %v223 = vld [vmem:[#allocation5 + $0x60] sm:$0xff]
    %v224 = vld [vmem:[#allocation5 + $0x68] sm:$0xff]
    %v225 = vld [vmem:[#allocation5 + $0x70] sm:$0xff]
    %v226 = vld [vmem:[#allocation5 + $0x78] sm:$0xff]
    %v227 = vld [vmem:[%s3] sm:$0x1]
    %v229 = vlaneseq
    %v230 = vshrl.u32 %v229, 7
    %v231 = vsub.s32 0, %v230
    %v232 = vrot.slane %v227, %v231
    %234 = vmatprep.subr.mxu0 0.0
    %235 = vmatpush1.msra.mxu0 %v211
    %236 = vmatprep.subr.mxu0 0.0
    %237 = vmatpush1.msra.mxu0 %v212
    %238 = vmatprep.subr.mxu0 0.0
    %239 = vmatpush1.msra.mxu0 %v213
    %240 = vmatprep.subr.mxu0 0.0
    %241 = vmatpush1.msra.mxu0 %v214
    %242 = vmatprep.subr.mxu0 0.0
    %243 = vmatpush1.msra.mxu0 %v215
    %244 = vmatprep.subr.mxu0 0.0
    %245 = vmatpush1.msra.mxu0 %v216
    %246 = vmatprep.subr.mxu0 0.0
    %247 = vmatpush1.msra.mxu0 %v217
    %248 = vmatprep.subr.mxu0 0.0
    %249 = vmatpush1.msra.mxu0 %v218
    %250 = vmatprep.subr.mxu0 0.0
    %251 = vmatpush1.msra.mxu0 %v219
    %252 = vmatprep.subr.mxu0 0.0
    %253 = vmatpush1.msra.mxu0 %v220
    %254 = vmatprep.subr.mxu0 0.0
    %255 = vmatpush1.msra.mxu0 %v221
    %256 = vmatprep.subr.mxu0 0.0
    %257 = vmatpush1.msra.mxu0 %v222
    %258 = vmatprep.subr.mxu0 0.0
    %259 = vmatpush1.msra.mxu0 %v223
    %260 = vmatprep.subr.mxu0 0.0
    %261 = vmatpush1.msra.mxu0 %v224
    %262 = vmatprep.subr.mxu0 0.0
    %263 = vmatpush1.msra.mxu0 %v225
    %264 = vmatprep.subr.mxu0 0.0
    %265 = vmatpush1.msra.mxu0 %v226
    %266 = vmatprep.subr.mxu0 0.0
    %267 = vmatpush1.msra.mxu0 0.0
    %268 = vmatprep.subr.mxu0 0.0
    %269 = vmatpush1.msra.mxu0 0.0
    %270 = vmatprep.subr.mxu0 0.0
    %271 = vmatpush1.msra.mxu0 0.0
    %272 = vmatprep.subr.mxu0 0.0
    %273 = vmatpush1.msra.mxu0 0.0
    %274 = vmatprep.subr.mxu0 0.0
    %275 = vmatpush1.msra.mxu0 0.0
    %276 = vmatprep.subr.mxu0 0.0
    %277 = vmatpush1.msra.mxu0 0.0
    %278 = vmatprep.subr.mxu0 0.0
    %279 = vmatpush1.msra.mxu0 0.0
    %280 = vmatprep.subr.mxu0 0.0
    %281 = vmatpush1.msra.mxu0 0.0
    %282 = vmatprep.subr.mxu0 0.0
    %283 = vmatpush1.msra.mxu0 0.0
    %284 = vmatprep.subr.mxu0 0.0
    %285 = vmatpush1.msra.mxu0 0.0
    %286 = vmatprep.subr.mxu0 0.0
    %287 = vmatpush1.msra.mxu0 0.0
    %288 = vmatprep.subr.mxu0 0.0
    %289 = vmatpush1.msra.mxu0 0.0
    %290 = vmatprep.subr.mxu0 0.0
    %291 = vmatpush1.msra.mxu0 0.0
    %292 = vmatprep.subr.mxu0 0.0
    %293 = vmatpush1.msra.mxu0 0.0
    %294 = vmatprep.subr.mxu0 0.0
    %295 = vmatpush1.msra.mxu0 0.0
    %296 = vmatprep.subr.mxu0 0.0
    %297 = vmatpush1.msra.mxu0 0.0
    %298 = vmatprep.mubr.f32.mxu0 0.0
    %299 = vmatmul.mubr.f32.gmra.mrb[0].mxu0 %v210
    %v300 = vpop.f32.mrb[0].mxu0
    %v301 = vadd.f32 %v232, %v300
    %v302 = vpop.f32.mrb[0].mxu0
    %303 = vdwg.mxu0
    %v304 = vmax.f32 %v301, 0.0
    %v305 = vld [vmem:[#allocation7] sm:$0xff]
    %v306 = vld [vmem:[#allocation7 + $0x8] sm:$0xff]
    %v307 = vld [vmem:[#allocation7 + $0x10] sm:$0xff]
    %v308 = vld [vmem:[#allocation7 + $0x18] sm:$0xff]
    %v309 = vld [vmem:[#allocation7 + $0x20] sm:$0xff]
    %v310 = vld [vmem:[#allocation7 + $0x28] sm:$0xff]
    %v311 = vld [vmem:[#allocation7 + $0x30] sm:$0xff]
    %v312 = vld [vmem:[#allocation7 + $0x38] sm:$0xff]
    %v313 = vld [vmem:[#allocation7 + $0x40] sm:$0xff]
    %v314 = vld [vmem:[#allocation7 + $0x48] sm:$0xff]
    %v315 = vld [vmem:[#allocation7 + $0x50] sm:$0xff]
    %v316 = vld [vmem:[#allocation7 + $0x58] sm:$0xff]
    %v317 = vld [vmem:[#allocation7 + $0x60] sm:$0xff]
    %v318 = vld [vmem:[#allocation7 + $0x68] sm:$0xff]
    %v319 = vld [vmem:[#allocation7 + $0x70] sm:$0xff]
    %v320 = vld [vmem:[#allocation7 + $0x78] sm:$0xff]
    %v321 = vld [vmem:[%s5] sm:$0x1]
    %v323 = vlaneseq
    %v324 = vshrl.u32 %v323, 7
    %v325 = vsub.s32 0, %v324
    %v326 = vrot.slane %v321, %v325
    %328 = vmatprep.subr.mxu0 0.0
    %329 = vmatpush1.msra.mxu0 %v305
    %330 = vmatprep.subr.mxu0 0.0
    %331 = vmatpush1.msra.mxu0 %v306
    %332 = vmatprep.subr.mxu0 0.0
    %333 = vmatpush1.msra.mxu0 %v307
    %334 = vmatprep.subr.mxu0 0.0
    %335 = vmatpush1.msra.mxu0 %v308
    %336 = vmatprep.subr.mxu0 0.0
    %337 = vmatpush1.msra.mxu0 %v309
    %338 = vmatprep.subr.mxu0 0.0
    %339 = vmatpush1.msra.mxu0 %v310
    %340 = vmatprep.subr.mxu0 0.0
    %341 = vmatpush1.msra.mxu0 %v311
    %342 = vmatprep.subr.mxu0 0.0
    %343 = vmatpush1.msra.mxu0 %v312
    %344 = vmatprep.subr.mxu0 0.0
    %345 = vmatpush1.msra.mxu0 %v313
    %346 = vmatprep.subr.mxu0 0.0
    %347 = vmatpush1.msra.mxu0 %v314
    %348 = vmatprep.subr.mxu0 0.0
    %349 = vmatpush1.msra.mxu0 %v315
    %350 = vmatprep.subr.mxu0 0.0
    %351 = vmatpush1.msra.mxu0 %v316
    %352 = vmatprep.subr.mxu0 0.0
    %353 = vmatpush1.msra.mxu0 %v317
    %354 = vmatprep.subr.mxu0 0.0
    %355 = vmatpush1.msra.mxu0 %v318
    %356 = vmatprep.subr.mxu0 0.0
    %357 = vmatpush1.msra.mxu0 %v319
    %358 = vmatprep.subr.mxu0 0.0
    %359 = vmatpush1.msra.mxu0 %v320
    %360 = vmatprep.subr.mxu0 0.0
    %361 = vmatpush1.msra.mxu0 0.0
    %362 = vmatprep.subr.mxu0 0.0
    %363 = vmatpush1.msra.mxu0 0.0
    %364 = vmatprep.subr.mxu0 0.0
    %365 = vmatpush1.msra.mxu0 0.0
    %366 = vmatprep.subr.mxu0 0.0
    %367 = vmatpush1.msra.mxu0 0.0
    %368 = vmatprep.subr.mxu0 0.0
    %369 = vmatpush1.msra.mxu0 0.0
    %370 = vmatprep.subr.mxu0 0.0
    %371 = vmatpush1.msra.mxu0 0.0
    %372 = vmatprep.subr.mxu0 0.0
    %373 = vmatpush1.msra.mxu0 0.0
    %374 = vmatprep.subr.mxu0 0.0
    %375 = vmatpush1.msra.mxu0 0.0
    %376 = vmatprep.subr.mxu0 0.0
    %377 = vmatpush1.msra.mxu0 0.0
    %378 = vmatprep.subr.mxu0 0.0
    %379 = vmatpush1.msra.mxu0 0.0
    %380 = vmatprep.subr.mxu0 0.0
    %381 = vmatpush1.msra.mxu0 0.0
    %382 = vmatprep.subr.mxu0 0.0
    %383 = vmatpush1.msra.mxu0 0.0
    %384 = vmatprep.subr.mxu0 0.0
    %385 = vmatpush1.msra.mxu0 0.0
    %386 = vmatprep.subr.mxu0 0.0
    %387 = vmatpush1.msra.mxu0 0.0
    %388 = vmatprep.subr.mxu0 0.0
    %389 = vmatpush1.msra.mxu0 0.0
    %390 = vmatprep.subr.mxu0 0.0
    %391 = vmatpush1.msra.mxu0 0.0
    %392 = vmatprep.mubr.f32.mxu0 0.0
    %393 = vmatmul.mubr.f32.gmra.mrb[0].mxu0 %v304
    %v394 = vpop.f32.mrb[0].mxu0
    %v395 = vadd.f32 %v326, %v394
    %v396 = vpop.f32.mrb[0].mxu0
    %397 = vdwg.mxu0
    %v398 = vxor.u32 %v395, 2147483648
    %v399 = vmul.f32 %v398, 1.442695
    %v400 = vpow.pop %v399
    %v401 = vadd.f32 %v400, 1.0
    %v402 = vrcp.pop %v401
    %v403 = vmul.f32 1.0, %v402
    %404 = vst [vmem:[#allocation8] sm:$0xff] %v403
    // Predicated region
    $region38: #{_nlp_forward_impl.1} parent=1 // pred_check
      _
    $region39: #{_nlp_forward_impl.1} parent=1 // pred_check_branch
      %406 = sbr.rel (0) target = $region41
    $region40: #{_nlp_forward_impl.1} parent=1 // pred_region
      %s408 = ssub.s32 128, 128
      %409 = vsyncadd [#allocation4], %s408
      %s411 = sshll.u32 [#allocation8], 4
      %s412 = int_to_ptr.vmem [resolvable:$true] %s411
      %414 = dma.vmem_to_hbm [thread:$0]  %s412, 128, %s6, [#allocation4]
    $region41: #{_nlp_forward_impl.1} parent=1 // pred_fallthru
      _
    // Predicated region
    $region42: #{_nlp_forward_impl.1} parent=1 // pred_check
      _
    $region43: #{_nlp_forward_impl.1} parent=1 // pred_check_branch
      %416 = sbr.rel (0) target = $region45
    $region44: #{_nlp_forward_impl.1} parent=1 // pred_region
      %417 = dma.done [#allocation4], 128
    $region45: #{_nlp_forward_impl.1} parent=1 // pred_fallthru
      _
    %418 = vsyncpa [#allocation3], 1
    %419 = vsyncpa [#allocation6], 1
    %420 = vsyncpa [#allocation4], 1

</llo_original>
